<compile_context>
chip_gen: v7x
topology: tpu7x:2x2x1
jax: 0.10.0
libtpu: 0.0.40
codegen_flags: <defaults>
</compile_context>

<pallas_src>
import functools

import jax
import jax.numpy as jnp
from jax.experimental import pallas as pl
from jax.experimental.pallas import tpu as pltpu

_SUBLANE = 8  # f32 sublane packing


def _rnn_seq_kernel(x_ref, h0_ref, mask_ref,
                    wxh_ref, whh_ref, bh_ref,
                    wxo_ref, who_ref, bo_ref,
                    out_ref, hid_ref, *, T, Bp):
    """Whole-sequence Char-RNN cell in a single (gridless) kernel invocation.

    x_ref: (T*Bp, I) inputs, time-major flattened; h0_ref: (Bp, H);
    mask_ref: (T*Bp, 1) = 1.0 for real batch rows, 0.0 for padded rows.
    Weights are the split, pre-transposed i2h / i2o matrices.
    """
    # ---- Input projection, hoisted off the recurrent critical path -----------
    # ONE (T*Bp, I) @ (I, H) matmul; bias broadcast happens once (not per step).
    # Masking padded rows to exactly 0 keeps their hidden state identically 0.
    xproj = (jnp.dot(x_ref[...], wxh_ref[...], preferred_element_type=jnp.float32)
             + bh_ref[...]) * mask_ref[...]

    # ---- Serial recurrence: h^{t+1} = xproj[t] + h^{t} @ W_hh -----------------
    # T is small and static: the Python loop fully unrolls at trace time with
    # static, sublane-aligned slice starts (same code as fori_loop(unroll=True)).
    whh = whh_ref[...]
    h = h0_ref[...]
    for t in range(T - 1):
        h = xproj[t * Bp:(t + 1) * Bp, :] + jnp.dot(
            h, whh, preferred_element_type=jnp.float32)
    h_prev = h  # hidden entering the final step; the i2o head reads this one.
    hid_ref[...] = xproj[(T - 1) * Bp:T * Bp, :] + jnp.dot(
        h_prev, whh, preferred_element_type=jnp.float32)

    # ---- Classification head + log_softmax: exactly once, after the loop ----
    x_last = x_ref[(T - 1) * Bp:T * Bp, :]
    logits = (jnp.dot(x_last, wxo_ref[...], preferred_element_type=jnp.float32)
              + jnp.dot(h_prev, who_ref[...], preferred_element_type=jnp.float32)
              + bo_ref[...])
    m = jnp.max(logits, axis=1, keepdims=True)
    s = logits - m
    lse = jnp.log(jnp.sum(jnp.exp(s), axis=1, keepdims=True))
    out_ref[...] = s - lse


def prepare_params(w_i2h, b_i2h, w_i2o, b_i2o):
    """Once-per-model weight prep (hoisted out of the sequence path).

    PyTorch layout: w_i2h (H, I+H), w_i2o (O, I+H). Produces pre-transposed
    weights split along the contracting dim AND split per head (no fused H+O
    lane dim -> no per-step lane subselect):
      w_xh (I, H)  w_hh (H, H)  b_h (1, H)   -- recurrence
      w_xo (I, O)  w_ho (H, O)  b_o (1, O)   -- classification head
    """
    H = w_i2h.shape[0]
    I = w_i2h.shape[1] - H
    O = w_i2o.shape[0]
    w_i2h_t = w_i2h.T.astype(jnp.float32)   # (I+H, H)
    w_i2o_t = w_i2o.T.astype(jnp.float32)   # (I+H, O)
    return {
        "w_xh": w_i2h_t[:I], "w_hh": w_i2h_t[I:],
        "b_h": b_i2h.reshape(1, H).astype(jnp.float32),
        "w_xo": w_i2o_t[:I], "w_ho": w_i2o_t[I:],
        "b_o": b_i2o.reshape(1, O).astype(jnp.float32),
    }


def rnn_sequence(x_seq, h0, params):
    """Run the RNN over a whole sequence in one kernel.

    x_seq: (T, B, I) float, h0: (B, H) float.
    Returns (log_probs (B, O) of the LAST step, final hidden (B, H)).
    Note: only the final step's log_softmax is computed (that is all the
    classification usage consumes); per-step outputs are not returned.
    """
    w_xh, w_hh, b_h = params["w_xh"], params["w_hh"], params["b_h"]
    w_xo, w_ho, b_o = params["w_xo"], params["w_ho"], params["b_o"]
    T, B, I = x_seq.shape
    H = w_hh.shape[0]
    O = w_xo.shape[1]

    # Sublane-full batch (8 rows for f32); padded rows are masked in-kernel.
    Bp = max(_SUBLANE, ((B + _SUBLANE - 1) // _SUBLANE) * _SUBLANE)
    x_seq = x_seq.astype(jnp.float32)
    h0 = h0.astype(jnp.float32)
    if Bp != B:
        x_seq = jnp.pad(x_seq, ((0, 0), (0, Bp - B), (0, 0)))
        h0 = jnp.pad(h0, ((0, Bp - B), (0, 0)))
    x_flat = x_seq.reshape(T * Bp, I)                      # time-major rows
    mask = ((jnp.arange(T * Bp) % Bp) < B).astype(jnp.float32).reshape(T * Bp, 1)

    kernel = functools.partial(_rnn_seq_kernel, T=T, Bp=Bp)
    vmem = pl.BlockSpec(memory_space=pltpu.MemorySpace.VMEM)

    out, hid = pl.pallas_call(
        kernel,
        out_shape=(jax.ShapeDtypeStruct((Bp, O), jnp.float32),
                   jax.ShapeDtypeStruct((Bp, H), jnp.float32)),
        in_specs=[vmem] * 9,
        out_specs=(vmem, vmem),
        cost_estimate=pl.CostEstimate(
            flops=2 * T * Bp * I * H + 2 * T * Bp * H * H + 2 * Bp * (I + H) * O,
            transcendentals=Bp * (O + 1),
            bytes_accessed=4 * (T * Bp * (I + 1) + Bp * H
                                + (I + H) * (H + O) + (H + O) + Bp * (H + O)),
        ),
    )(x_flat, h0, mask, w_xh, w_hh, b_h, w_xo, w_ho, b_o)
    return out[:B], hid[:B]


def rnn_forward(x, h, params):
    """Single-step module forward: (input, hidden) -> (log_softmax(i2o), i2h)."""
    return rnn_sequence(x[None], h, params)


if __name__ == "__main__":
    B, T = 2, 8
    INPUT, HIDDEN, OUTPUT = 32, 32, 18  # n_letters-ish one-hot, hidden, n_categories

    key = jax.random.PRNGKey(0)
    k_idx, k_wh, k_bh, k_wo, k_bo = jax.random.split(key, 5)

    bound = 1.0 / jnp.sqrt(INPUT + HIDDEN)
    w_i2h = jax.random.uniform(k_wh, (HIDDEN, INPUT + HIDDEN),
                               minval=-bound, maxval=bound, dtype=jnp.float32)
    b_i2h = jax.random.uniform(k_bh, (HIDDEN,),
                               minval=-bound, maxval=bound, dtype=jnp.float32)
    w_i2o = jax.random.uniform(k_wo, (OUTPUT, INPUT + HIDDEN),
                               minval=-bound, maxval=bound, dtype=jnp.float32)
    b_i2o = jax.random.uniform(k_bo, (OUTPUT,),
                               minval=-bound, maxval=bound, dtype=jnp.float32)

    # One-hot character sequence, like classify_names' line_to_tensor.
    char_idx = jax.random.randint(k_idx, (T, B), 0, INPUT)
    x_seq = jax.nn.one_hot(char_idx, INPUT, dtype=jnp.float32)  # (T, B, I)
    h0 = jnp.zeros((B, HIDDEN), dtype=jnp.float32)              # init_hidden()

    params = prepare_params(w_i2h, b_i2h, w_i2o, b_i2o)         # hoisted, once per model

    out, h_final = jax.jit(rnn_sequence)(x_seq, h0, params)
    jax.block_until_ready((out, h_final))

    # Pure-JAX reference with per-step module semantics.
    h_ref = h0
    logits = None
    for t in range(T):
        comb = jnp.concatenate([x_seq[t], h_ref], axis=1)
        logits = comb @ w_i2o.T + b_i2o
        h_ref = comb @ w_i2h.T + b_i2h
    out_ref = jax.nn.log_softmax(logits, axis=1)
    assert jnp.allclose(h_final, h_ref, atol=1e-5), "fused-sequence hidden mismatch"
    assert jnp.allclose(out, out_ref, atol=1e-5), "fused-sequence log-softmax mismatch"

    # Single-step path matches the PyTorch forward() exactly (T == 1).
    out1, h1 = jax.jit(rnn_forward)(x_seq[0], h0, params)
    jax.block_until_ready((out1, h1))
    comb1 = jnp.concatenate([x_seq[0], h0], axis=1)
    assert jnp.allclose(h1, comb1 @ w_i2h.T + b_i2h, atol=1e-5), "step hidden mismatch"
    assert jnp.allclose(out1, jax.nn.log_softmax(comb1 @ w_i2o.T + b_i2o, axis=1),
                        atol=1e-5), "step output mismatch"

    print("KERNEL_OK")
</pallas_src>

<mosaic_0001>
module attributes {stable_mosaic.version = 11 : i64} {
  func.func @_rnn_seq_kernel(%arg0: memref<64x32xf32, #tpu.memory_space<vmem>>, %arg1: memref<8x32xf32, #tpu.memory_space<vmem>>, %arg2: memref<64x1xf32, #tpu.memory_space<vmem>>, %arg3: memref<32x32xf32, #tpu.memory_space<vmem>>, %arg4: memref<32x32xf32, #tpu.memory_space<vmem>>, %arg5: memref<1x32xf32, #tpu.memory_space<vmem>>, %arg6: memref<32x18xf32, #tpu.memory_space<vmem>>, %arg7: memref<32x18xf32, #tpu.memory_space<vmem>>, %arg8: memref<1x18xf32, #tpu.memory_space<vmem>>, %arg9: memref<8x18xf32, #tpu.memory_space<vmem>>, %arg10: memref<8x32xf32, #tpu.memory_space<vmem>>) attributes {dimension_semantics = [], scalar_prefetch = 0 : i64, scratch_operands = 0 : i64, tpu.core_type = #tpu.core_type<tc>} {
    %c0 = arith.constant 0 : index
    %c0_0 = arith.constant 0 : index
    %0 = vector.load %arg0[%c0, %c0_0] : memref<64x32xf32, #tpu.memory_space<vmem>>, vector<64x32xf32>
    %c0_1 = arith.constant 0 : index
    %c0_2 = arith.constant 0 : index
    %1 = vector.load %arg3[%c0_1, %c0_2] : memref<32x32xf32, #tpu.memory_space<vmem>>, vector<32x32xf32>
    %cst = arith.constant dense<0.000000e+00> : vector<64x32xf32>
    %2 = tpu.matmul %0, %1, %cst {dimension_numbers = #tpu.dot_dimension_numbers<[1], [0], [0], [1], [0, 0, 1, 1], [], []>} : vector<64x32xf32>, vector<32x32xf32>, vector<64x32xf32> -> vector<64x32xf32>
    %c0_3 = arith.constant 0 : index
    %c0_4 = arith.constant 0 : index
    %3 = vector.load %arg5[%c0_3, %c0_4] : memref<1x32xf32, #tpu.memory_space<vmem>>, vector<1x32xf32>
    %4 = vector.broadcast %3 : vector<1x32xf32> to vector<64x32xf32>
    %5 = arith.addf %2, %4 : vector<64x32xf32>
    %c0_5 = arith.constant 0 : index
    %c0_6 = arith.constant 0 : index
    %6 = vector.load %arg2[%c0_5, %c0_6] : memref<64x1xf32, #tpu.memory_space<vmem>>, vector<64x1xf32>
    %7 = vector.broadcast %6 : vector<64x1xf32> to vector<64x32xf32>
    %8 = arith.mulf %5, %7 : vector<64x32xf32>
    %c0_7 = arith.constant 0 : index
    %c0_8 = arith.constant 0 : index
    %9 = vector.load %arg4[%c0_7, %c0_8] : memref<32x32xf32, #tpu.memory_space<vmem>>, vector<32x32xf32>
    %c0_9 = arith.constant 0 : index
    %c0_10 = arith.constant 0 : index
    %10 = vector.load %arg1[%c0_9, %c0_10] : memref<8x32xf32, #tpu.memory_space<vmem>>, vector<8x32xf32>
    %11 = vector.extract_strided_slice %8 {offsets = [0, 0], sizes = [8, 32], strides = [1, 1]} : vector<64x32xf32> to vector<8x32xf32>
    %cst_11 = arith.constant dense<0.000000e+00> : vector<8x32xf32>
    %12 = tpu.matmul %10, %9, %cst_11 {dimension_numbers = #tpu.dot_dimension_numbers<[1], [0], [0], [1], [0, 0, 1, 1], [], []>} : vector<8x32xf32>, vector<32x32xf32>, vector<8x32xf32> -> vector<8x32xf32>
    %13 = arith.addf %11, %12 : vector<8x32xf32>
    %14 = vector.extract_strided_slice %8 {offsets = [8, 0], sizes = [8, 32], strides = [1, 1]} : vector<64x32xf32> to vector<8x32xf32>
    %cst_12 = arith.constant dense<0.000000e+00> : vector<8x32xf32>
    %15 = tpu.matmul %13, %9, %cst_12 {dimension_numbers = #tpu.dot_dimension_numbers<[1], [0], [0], [1], [0, 0, 1, 1], [], []>} : vector<8x32xf32>, vector<32x32xf32>, vector<8x32xf32> -> vector<8x32xf32>
    %16 = arith.addf %14, %15 : vector<8x32xf32>
    %17 = vector.extract_strided_slice %8 {offsets = [16, 0], sizes = [8, 32], strides = [1, 1]} : vector<64x32xf32> to vector<8x32xf32>
    %cst_13 = arith.constant dense<0.000000e+00> : vector<8x32xf32>
    %18 = tpu.matmul %16, %9, %cst_13 {dimension_numbers = #tpu.dot_dimension_numbers<[1], [0], [0], [1], [0, 0, 1, 1], [], []>} : vector<8x32xf32>, vector<32x32xf32>, vector<8x32xf32> -> vector<8x32xf32>
    %19 = arith.addf %17, %18 : vector<8x32xf32>
    %20 = vector.extract_strided_slice %8 {offsets = [24, 0], sizes = [8, 32], strides = [1, 1]} : vector<64x32xf32> to vector<8x32xf32>
    %cst_14 = arith.constant dense<0.000000e+00> : vector<8x32xf32>
    %21 = tpu.matmul %19, %9, %cst_14 {dimension_numbers = #tpu.dot_dimension_numbers<[1], [0], [0], [1], [0, 0, 1, 1], [], []>} : vector<8x32xf32>, vector<32x32xf32>, vector<8x32xf32> -> vector<8x32xf32>
    %22 = arith.addf %20, %21 : vector<8x32xf32>
    %23 = vector.extract_strided_slice %8 {offsets = [32, 0], sizes = [8, 32], strides = [1, 1]} : vector<64x32xf32> to vector<8x32xf32>
    %cst_15 = arith.constant dense<0.000000e+00> : vector<8x32xf32>
    %24 = tpu.matmul %22, %9, %cst_15 {dimension_numbers = #tpu.dot_dimension_numbers<[1], [0], [0], [1], [0, 0, 1, 1], [], []>} : vector<8x32xf32>, vector<32x32xf32>, vector<8x32xf32> -> vector<8x32xf32>
    %25 = arith.addf %23, %24 : vector<8x32xf32>
    %26 = vector.extract_strided_slice %8 {offsets = [40, 0], sizes = [8, 32], strides = [1, 1]} : vector<64x32xf32> to vector<8x32xf32>
    %cst_16 = arith.constant dense<0.000000e+00> : vector<8x32xf32>
    %27 = tpu.matmul %25, %9, %cst_16 {dimension_numbers = #tpu.dot_dimension_numbers<[1], [0], [0], [1], [0, 0, 1, 1], [], []>} : vector<8x32xf32>, vector<32x32xf32>, vector<8x32xf32> -> vector<8x32xf32>
    %28 = arith.addf %26, %27 : vector<8x32xf32>
    %29 = vector.extract_strided_slice %8 {offsets = [48, 0], sizes = [8, 32], strides = [1, 1]} : vector<64x32xf32> to vector<8x32xf32>
    %cst_17 = arith.constant dense<0.000000e+00> : vector<8x32xf32>
    %30 = tpu.matmul %28, %9, %cst_17 {dimension_numbers = #tpu.dot_dimension_numbers<[1], [0], [0], [1], [0, 0, 1, 1], [], []>} : vector<8x32xf32>, vector<32x32xf32>, vector<8x32xf32> -> vector<8x32xf32>
    %31 = arith.addf %29, %30 : vector<8x32xf32>
    %32 = vector.extract_strided_slice %8 {offsets = [56, 0], sizes = [8, 32], strides = [1, 1]} : vector<64x32xf32> to vector<8x32xf32>
    %cst_18 = arith.constant dense<0.000000e+00> : vector<8x32xf32>
    %33 = tpu.matmul %31, %9, %cst_18 {dimension_numbers = #tpu.dot_dimension_numbers<[1], [0], [0], [1], [0, 0, 1, 1], [], []>} : vector<8x32xf32>, vector<32x32xf32>, vector<8x32xf32> -> vector<8x32xf32>
    %34 = arith.addf %32, %33 : vector<8x32xf32>
    %c0_19 = arith.constant 0 : index
    %c0_20 = arith.constant 0 : index
    %35 = vector.load %arg10[%c0_19, %c0_20] : memref<8x32xf32, #tpu.memory_space<vmem>>, vector<8x32xf32>
    tpu.vector_store %arg10[%c0_19, %c0_20], %34 {strides = array<i32>} : memref<8x32xf32, #tpu.memory_space<vmem>>, vector<8x32xf32>,
    %c56 = arith.constant 56 : index
    %c0_21 = arith.constant 0 : index
    %36 = vector.load %arg0[%c56, %c0_21] : memref<64x32xf32, #tpu.memory_space<vmem>>, vector<8x32xf32>
    %c0_22 = arith.constant 0 : index
    %c0_23 = arith.constant 0 : index
    %37 = vector.load %arg6[%c0_22, %c0_23] : memref<32x18xf32, #tpu.memory_space<vmem>>, vector<32x18xf32>
    %cst_24 = arith.constant dense<0.000000e+00> : vector<8x18xf32>
    %38 = tpu.matmul %36, %37, %cst_24 {dimension_numbers = #tpu.dot_dimension_numbers<[1], [0], [0], [1], [0, 0, 1, 1], [], []>} : vector<8x32xf32>, vector<32x18xf32>, vector<8x18xf32> -> vector<8x18xf32>
    %c0_25 = arith.constant 0 : index
    %c0_26 = arith.constant 0 : index
    %39 = vector.load %arg7[%c0_25, %c0_26] : memref<32x18xf32, #tpu.memory_space<vmem>>, vector<32x18xf32>
    %cst_27 = arith.constant dense<0.000000e+00> : vector<8x18xf32>
    %40 = tpu.matmul %31, %39, %cst_27 {dimension_numbers = #tpu.dot_dimension_numbers<[1], [0], [0], [1], [0, 0, 1, 1], [], []>} : vector<8x32xf32>, vector<32x18xf32>, vector<8x18xf32> -> vector<8x18xf32>
    %41 = arith.addf %38, %40 : vector<8x18xf32>
    %c0_28 = arith.constant 0 : index
    %c0_29 = arith.constant 0 : index
    %42 = vector.load %arg8[%c0_28, %c0_29] : memref<1x18xf32, #tpu.memory_space<vmem>>, vector<1x18xf32>
    %43 = vector.broadcast %42 : vector<1x18xf32> to vector<8x18xf32>
    %44 = arith.addf %41, %43 : vector<8x18xf32>
    %cst_30 = arith.constant dense<0xFF800000> : vector<8xf32>
    %45 = vector.multi_reduction <maximumf>, %44, %cst_30 [1] : vector<8x18xf32> to vector<8xf32>
    %46 = vector.shape_cast %45 : vector<8xf32> to vector<8x1xf32>
    %47 = vector.broadcast %46 : vector<8x1xf32> to vector<8x18xf32>
    %48 = arith.subf %44, %47 : vector<8x18xf32>
    %49 = math.exp %48 : vector<8x18xf32>
    %cst_31 = arith.constant dense<0.000000e+00> : vector<8xf32>
    %50 = vector.multi_reduction <add>, %49, %cst_31 [1] : vector<8x18xf32> to vector<8xf32>
    %51 = vector.shape_cast %50 : vector<8xf32> to vector<8x1xf32>
    %52 = math.log %51 : vector<8x1xf32>
    %53 = vector.broadcast %52 : vector<8x1xf32> to vector<8x18xf32>
    %54 = arith.subf %48, %53 : vector<8x18xf32>
    %c0_32 = arith.constant 0 : index
    %c0_33 = arith.constant 0 : index
    %55 = vector.load %arg9[%c0_32, %c0_33] : memref<8x18xf32, #tpu.memory_space<vmem>>, vector<8x18xf32>
    tpu.vector_store %arg9[%c0_32, %c0_33], %54 {strides = array<i32>} : memref<8x18xf32, #tpu.memory_space<vmem>>, vector<8x18xf32>,
    return
  }
}

</mosaic_0001>

<llo_original>
// kernel: rnn_sequence.1
$region0: #{rnn_sequence.1}
  #allocation0 [shape = 'u32[]', space=smem, size = 0x4, offset = 0x4, fixed_abs, tag = 'smem constant byte address 0x4 - core index']
  #allocation1 [shape = 'u32[144,128]{1,0:T(1,128)}', space=vmem, size = 0x12000, scoped, tag = 'internal scratch']
  %s0 = inlined_call_operand.vmem [shape: f32[64,32], index: 0, kind: input, shape index: {}]
  %s1 = inlined_call_operand.vmem [shape: f32[8,32], index: 1, kind: input, shape index: {}]
  %s2 = inlined_call_operand.vmem [shape: f32[64,1], index: 2, kind: input, shape index: {}]
  %s3 = inlined_call_operand.vmem [shape: f32[32,32], index: 3, kind: input, shape index: {}]
  %s4 = inlined_call_operand.vmem [shape: f32[32,32], index: 4, kind: input, shape index: {}]
  %s5 = inlined_call_operand.vmem [shape: f32[1,32], index: 5, kind: input, shape index: {}]
  %s6 = inlined_call_operand.vmem [shape: f32[32,18], index: 6, kind: input, shape index: {}]
  %s7 = inlined_call_operand.vmem [shape: f32[32,18], index: 7, kind: input, shape index: {}]
  %s8 = inlined_call_operand.vmem [shape: f32[1,18], index: 8, kind: input, shape index: {}]
  %s9 = inlined_call_operand.vmem [shape: f32[8,18], index: 9, kind: output, shape index: {0}]
  %s10 = inlined_call_operand.vmem [shape: f32[8,32], index: 10, kind: output, shape index: {1}]
  %11 = xla_tuple %s9, %s10
  %s12 = sld [smem:[#allocation0]]
  $region54: #{rnn_sequence.1} parent=0
    _
  %s14 = ssub.s32 1, %s12
  %s15 = scalar_select 0, %s14, %s12
  // Predicated region
  $region2: #{rnn_sequence.1} parent=0 // pred_check
    _
  $region3: #{rnn_sequence.1} parent=0 // pred_check_branch
    %17 = sbr.rel (0) target = $region5
  $region4: #{rnn_sequence.1} parent=0 // pred_region
    _
  $region5: #{rnn_sequence.1} parent=0 // pred_fallthru
    _
  // Predicated region
  $region6: #{rnn_sequence.1} parent=0 // pred_check
    _
  $region7: #{rnn_sequence.1} parent=0 // pred_check_branch
    %19 = sbr.rel (0) target = $region9
  $region8: #{rnn_sequence.1} parent=0 // pred_region
    _
  $region9: #{rnn_sequence.1} parent=0 // pred_fallthru
    _
  // Predicated region
  $region10: #{rnn_sequence.1} parent=0 // pred_check
    _
  $region11: #{rnn_sequence.1} parent=0 // pred_check_branch
    %21 = sbr.rel (0) target = $region13
  $region12: #{rnn_sequence.1} parent=0 // pred_region
    _
  $region13: #{rnn_sequence.1} parent=0 // pred_fallthru
    _
  // Predicated region
  $region14: #{rnn_sequence.1} parent=0 // pred_check
    _
  $region15: #{rnn_sequence.1} parent=0 // pred_check_branch
    %23 = sbr.rel (0) target = $region17
  $region16: #{rnn_sequence.1} parent=0 // pred_region
    _
  $region17: #{rnn_sequence.1} parent=0 // pred_fallthru
    _
  // Predicated region
  $region18: #{rnn_sequence.1} parent=0 // pred_check
    _
  $region19: #{rnn_sequence.1} parent=0 // pred_check_branch
    %25 = sbr.rel (0) target = $region21
  $region20: #{rnn_sequence.1} parent=0 // pred_region
    _
  $region21: #{rnn_sequence.1} parent=0 // pred_fallthru
    _
  // Predicated region
  $region22: #{rnn_sequence.1} parent=0 // pred_check
    _
  $region23: #{rnn_sequence.1} parent=0 // pred_check_branch
    %27 = sbr.rel (0) target = $region25
  $region24: #{rnn_sequence.1} parent=0 // pred_region
    _
  $region25: #{rnn_sequence.1} parent=0 // pred_fallthru
    _
  // Predicated region
  $region26: #{rnn_sequence.1} parent=0 // pred_check
    _
  $region27: #{rnn_sequence.1} parent=0 // pred_check_branch
    %29 = sbr.rel (0) target = $region29
  $region28: #{rnn_sequence.1} parent=0 // pred_region
    _
  $region29: #{rnn_sequence.1} parent=0 // pred_fallthru
    _
  // Predicated region
  $region30: #{rnn_sequence.1} parent=0 // pred_check
    _
  $region31: #{rnn_sequence.1} parent=0 // pred_check_branch
    %31 = sbr.rel (0) target = $region33
  $region32: #{rnn_sequence.1} parent=0 // pred_region
    _
  $region33: #{rnn_sequence.1} parent=0 // pred_fallthru
    _
  // Predicated region
  $region34: #{rnn_sequence.1} parent=0 // pred_check
    _
  $region35: #{rnn_sequence.1} parent=0 // pred_check_branch
    %33 = sbr.rel (0) target = $region37
  $region36: #{rnn_sequence.1} parent=0 // pred_region
    _
  $region37: #{rnn_sequence.1} parent=0 // pred_fallthru
    _
  %v34 = vld [vmem:[%s0] sm:$0xff]
  %v35 = vld [vmem:[%s0 + $0x8] sm:$0xff]
  %v36 = vld [vmem:[%s0 + $0x10] sm:$0xff]
  %v37 = vld [vmem:[%s0 + $0x18] sm:$0xff]
  %v38 = vld [vmem:[%s0 + $0x20] sm:$0xff]
  %v39 = vld [vmem:[%s0 + $0x28] sm:$0xff]
  %v40 = vld [vmem:[%s0 + $0x30] sm:$0xff]
  %v41 = vld [vmem:[%s0 + $0x38] sm:$0xff]
  %v42 = vld [vmem:[%s3] sm:$0xff]
  %v43 = vld [vmem:[%s3 + $0x8] sm:$0xff]
  %v44 = vld [vmem:[%s3 + $0x10] sm:$0xff]
  %v45 = vld [vmem:[%s3 + $0x18] sm:$0xff]
  %v46 = vld [vmem:[%s5] sm:$0x1]
  %v48 = vlaneseq
  %v49 = vshrl.u32 %v48, 7
  %v50 = vsub.s32 0, %v49
  %v51 = vrot.slane %v46, %v50
  %vm53 = vcmask 261120
  %v55 = vsel %vm53, %v34, 0
  %v58 = vsel %vm53, %v35, 0
  %v61 = vsel %vm53, %v36, 0
  %v64 = vsel %vm53, %v37, 0
  %v67 = vsel %vm53, %v38, 0
  %v70 = vsel %vm53, %v39, 0
  %v73 = vsel %vm53, %v40, 0
  %v76 = vsel %vm53, %v41, 0
  %78 = vmatprep.subr.mxu0 0.0
  %79 = vmatpush1.msra.mxu0 %v42
  %80 = vmatprep.subr.mxu0 0.0
  %81 = vmatpush1.msra.mxu0 %v43
  %82 = vmatprep.subr.mxu0 0.0
  %83 = vmatpush1.msra.mxu0 %v44
  %84 = vmatprep.subr.mxu0 0.0
  %85 = vmatpush1.msra.mxu0 %v45
  %86 = vmatprep.subr.mxu0 0.0
  %87 = vmatpush1.msra.mxu0 0.0
  %88 = vmatprep.subr.mxu0 0.0
  %89 = vmatpush1.msra.mxu0 0.0
  %90 = vmatprep.subr.mxu0 0.0
  %91 = vmatpush1.msra.mxu0 0.0
  %92 = vmatprep.subr.mxu0 0.0
  %93 = vmatpush1.msra.mxu0 0.0
  %94 = vmatprep.subr.mxu0 0.0
  %95 = vmatpush1.msra.mxu0 0.0
  %96 = vmatprep.subr.mxu0 0.0
  %97 = vmatpush1.msra.mxu0 0.0
  %98 = vmatprep.subr.mxu0 0.0
  %99 = vmatpush1.msra.mxu0 0.0
  %100 = vmatprep.subr.mxu0 0.0
  %101 = vmatpush1.msra.mxu0 0.0
  %102 = vmatprep.subr.mxu0 0.0
  %103 = vmatpush1.msra.mxu0 0.0
  %104 = vmatprep.subr.mxu0 0.0
  %105 = vmatpush1.msra.mxu0 0.0
  %106 = vmatprep.subr.mxu0 0.0
  %107 = vmatpush1.msra.mxu0 0.0
  %108 = vmatprep.subr.mxu0 0.0
  %109 = vmatpush1.msra.mxu0 0.0
  %110 = vmatprep.subr.mxu0 0.0
  %111 = vmatpush1.msra.mxu0 0.0
  %112 = vmatprep.subr.mxu0 0.0
  %113 = vmatpush1.msra.mxu0 0.0
  %114 = vmatprep.subr.mxu0 0.0
  %115 = vmatpush1.msra.mxu0 0.0
  %116 = vmatprep.subr.mxu0 0.0
  %117 = vmatpush1.msra.mxu0 0.0
  %118 = vmatprep.subr.mxu0 0.0
  %119 = vmatpush1.msra.mxu0 0.0
  %120 = vmatprep.subr.mxu0 0.0
  %121 = vmatpush1.msra.mxu0 0.0
  %122 = vmatprep.subr.mxu0 0.0
  %123 = vmatpush1.msra.mxu0 0.0
  %124 = vmatprep.subr.mxu0 0.0
  %125 = vmatpush1.msra.mxu0 0.0
  %126 = vmatprep.subr.mxu0 0.0
  %127 = vmatpush1.msra.mxu0 0.0
  %128 = vmatprep.subr.mxu0 0.0
  %129 = vmatpush1.msra.mxu0 0.0
  %130 = vmatprep.subr.mxu0 0.0
  %131 = vmatpush1.msra.mxu0 0.0
  %132 = vmatprep.subr.mxu0 0.0
  %133 = vmatpush1.msra.mxu0 0.0
  %134 = vmatprep.subr.mxu0 0.0
  %135 = vmatpush1.msra.mxu0 0.0
  %136 = vmatprep.subr.mxu0 0.0
  %137 = vmatpush1.msra.mxu0 0.0
  %138 = vmatprep.subr.mxu0 0.0
  %139 = vmatpush1.msra.mxu0 0.0
  %140 = vmatprep.subr.mxu0 0.0
  %141 = vmatpush1.msra.mxu0 0.0
  %142 = vmatprep.mubr.f32.mxu0 0.0
  %143 = vmatmul.mubr.f32.gmra.mrb[0].mxu0 %v55
  %v144 = vpop.f32.mrb[0].mxu0
  %v145 = vadd.f32 %v51, %v144
  %v146 = vpop.f32.mrb[0].mxu0
  %147 = vmatprep.mubr.f32.mxu0 0.0
  %148 = vmatmul.mubr.f32.gmra.mrb[0].mxu0 %v58
  %v149 = vpop.f32.mrb[0].mxu0
  %v150 = vadd.f32 %v51, %v149
  %v151 = vpop.f32.mrb[0].mxu0
  %152 = vmatprep.mubr.f32.mxu0 0.0
  %153 = vmatmul.mubr.f32.gmra.mrb[0].mxu0 %v61
  %v154 = vpop.f32.mrb[0].mxu0
  %v155 = vadd.f32 %v51, %v154
  %v156 = vpop.f32.mrb[0].mxu0
  %157 = vmatprep.mubr.f32.mxu0 0.0
  %158 = vmatmul.mubr.f32.gmra.mrb[0].mxu0 %v64
  %v159 = vpop.f32.mrb[0].mxu0
  %v160 = vadd.f32 %v51, %v159
  %v161 = vpop.f32.mrb[0].mxu0
  %162 = vmatprep.mubr.f32.mxu0 0.0
  %163 = vmatmul.mubr.f32.gmra.mrb[0].mxu0 %v67
  %v164 = vpop.f32.mrb[0].mxu0
  %v165 = vadd.f32 %v51, %v164
  %v166 = vpop.f32.mrb[0].mxu0
  %167 = vmatprep.mubr.f32.mxu0 0.0
  %168 = vmatmul.mubr.f32.gmra.mrb[0].mxu0 %v70
  %v169 = vpop.f32.mrb[0].mxu0
  %v170 = vadd.f32 %v51, %v169
  %v171 = vpop.f32.mrb[0].mxu0
  %172 = vmatprep.mubr.f32.mxu0 0.0
  %173 = vmatmul.mubr.f32.gmra.mrb[0].mxu0 %v73
  %v174 = vpop.f32.mrb[0].mxu0
  %v175 = vadd.f32 %v51, %v174
  %v176 = vpop.f32.mrb[0].mxu0
  %177 = vmatprep.mubr.f32.mxu0 0.0
  %178 = vmatmul.mubr.f32.gmra.mrb[0].mxu0 %v76
  %v179 = vpop.f32.mrb[0].mxu0
  %v180 = vadd.f32 %v51, %v179
  %v181 = vpop.f32.mrb[0].mxu0
  %182 = vdwg.mxu0
  %v183 = vld [vmem:[%s2] sm:$0xff]
  %v184 = vld [vmem:[%s2 + $0x8] sm:$0xff]
  %v185 = vld [vmem:[%s2 + $0x10] sm:$0xff]
  %v186 = vld [vmem:[%s2 + $0x18] sm:$0xff]
  %v187 = vld [vmem:[%s2 + $0x20] sm:$0xff]
  %v188 = vld [vmem:[%s2 + $0x28] sm:$0xff]
  %v189 = vld [vmem:[%s2 + $0x30] sm:$0xff]
  %v190 = vld [vmem:[%s2 + $0x38] sm:$0xff]
  %192 = vset.pattern.permute.xlu0 0
  %193 = vperm.xlu0 %192, %v183
  %v194 = vpop.permute.xlu0 %193
  %197 = vset.pattern.permute.xlu0 0
  %198 = vperm.xlu0 %197, %v184
  %v199 = vpop.permute.xlu0 %198
  %202 = vset.pattern.permute.xlu0 0
  %203 = vperm.xlu0 %202, %v185
  %v204 = vpop.permute.xlu0 %203
  %207 = vset.pattern.permute.xlu0 0
  %208 = vperm.xlu0 %207, %v186
  %v209 = vpop.permute.xlu0 %208
  %212 = vset.pattern.permute.xlu0 0
  %213 = vperm.xlu0 %212, %v187
  %v214 = vpop.permute.xlu0 %213
  %217 = vset.pattern.permute.xlu0 0
  %218 = vperm.xlu0 %217, %v188
  %v219 = vpop.permute.xlu0 %218
  %222 = vset.pattern.permute.xlu0 0
  %223 = vperm.xlu0 %222, %v189
  %v224 = vpop.permute.xlu0 %223
  %227 = vset.pattern.permute.xlu0 0
  %228 = vperm.xlu0 %227, %v190
  %v229 = vpop.permute.xlu0 %228
  %v231 = vmul.f32 %v145, %v194
  %v232 = vmul.f32 %v150, %v199
  %v233 = vmul.f32 %v155, %v204
  %v234 = vmul.f32 %v160, %v209
  %v235 = vmul.f32 %v165, %v214
  %v236 = vmul.f32 %v170, %v219
  %v237 = vmul.f32 %v175, %v224
  %v238 = vmul.f32 %v180, %v229
  %v239 = vld [vmem:[%s4] sm:$0xff]
  %v240 = vld [vmem:[%s4 + $0x8] sm:$0xff]
  %v241 = vld [vmem:[%s4 + $0x10] sm:$0xff]
  %v242 = vld [vmem:[%s4 + $0x18] sm:$0xff]
  %v243 = vld [vmem:[%s1] sm:$0xff]
  %v245 = vsel %vm53, %v243, 0
  %247 = vmatprep.subr.mxu0 0.0
  %248 = vmatpush1.msra.mxu0 %v239
  %249 = vmatprep.subr.mxu0 0.0
  %250 = vmatpush1.msra.mxu0 %v240
  %251 = vmatprep.subr.mxu0 0.0
  %252 = vmatpush1.msra.mxu0 %v241
  %253 = vmatprep.subr.mxu0 0.0
  %254 = vmatpush1.msra.mxu0 %v242
  %255 = vmatprep.subr.mxu0 0.0
  %256 = vmatpush1.msra.mxu0 0.0
  %257 = vmatprep.subr.mxu0 0.0
  %258 = vmatpush1.msra.mxu0 0.0
  %259 = vmatprep.subr.mxu0 0.0
  %260 = vmatpush1.msra.mxu0 0.0
  %261 = vmatprep.subr.mxu0 0.0
  %262 = vmatpush1.msra.mxu0 0.0
  %263 = vmatprep.subr.mxu0 0.0
  %264 = vmatpush1.msra.mxu0 0.0
  %265 = vmatprep.subr.mxu0 0.0
  %266 = vmatpush1.msra.mxu0 0.0
  %267 = vmatprep.subr.mxu0 0.0
  %268 = vmatpush1.msra.mxu0 0.0
  %269 = vmatprep.subr.mxu0 0.0
  %270 = vmatpush1.msra.mxu0 0.0
  %271 = vmatprep.subr.mxu0 0.0
  %272 = vmatpush1.msra.mxu0 0.0
  %273 = vmatprep.subr.mxu0 0.0
  %274 = vmatpush1.msra.mxu0 0.0
  %275 = vmatprep.subr.mxu0 0.0
  %276 = vmatpush1.msra.mxu0 0.0
  %277 = vmatprep.subr.mxu0 0.0
  %278 = vmatpush1.msra.mxu0 0.0
  %279 = vmatprep.subr.mxu0 0.0
  %280 = vmatpush1.msra.mxu0 0.0
  %281 = vmatprep.subr.mxu0 0.0
  %282 = vmatpush1.msra.mxu0 0.0
  %283 = vmatprep.subr.mxu0 0.0
  %284 = vmatpush1.msra.mxu0 0.0
  %285 = vmatprep.subr.mxu0 0.0
  %286 = vmatpush1.msra.mxu0 0.0
  %287 = vmatprep.subr.mxu0 0.0
  %288 = vmatpush1.msra.mxu0 0.0
  %289 = vmatprep.subr.mxu0 0.0
  %290 = vmatpush1.msra.mxu0 0.0
  %291 = vmatprep.subr.mxu0 0.0
  %292 = vmatpush1.msra.mxu0 0.0
  %293 = vmatprep.subr.mxu0 0.0
  %294 = vmatpush1.msra.mxu0 0.0
  %295 = vmatprep.subr.mxu0 0.0
  %296 = vmatpush1.msra.mxu0 0.0
  %297 = vmatprep.subr.mxu0 0.0
  %298 = vmatpush1.msra.mxu0 0.0
  %299 = vmatprep.subr.mxu0 0.0
  %300 = vmatpush1.msra.mxu0 0.0
  %301 = vmatprep.subr.mxu0 0.0
  %302 = vmatpush1.msra.mxu0 0.0
  %303 = vmatprep.subr.mxu0 0.0
  %304 = vmatpush1.msra.mxu0 0.0
  %305 = vmatprep.subr.mxu0 0.0
  %306 = vmatpush1.msra.mxu0 0.0
  %307 = vmatprep.subr.mxu0 0.0
  %308 = vmatpush1.msra.mxu0 0.0
  %309 = vmatprep.subr.mxu0 0.0
  %310 = vmatpush1.msra.mxu0 0.0
  %311 = vmatprep.mubr.f32.mxu0 0.0
  %312 = vmatmul.mubr.f32.gmra.mrb[0].mxu0 %v245
  %v313 = vpop.f32.mrb[0].mxu0
  %v314 = vadd.f32 0.0, %v313
  %v315 = vpop.f32.mrb[0].mxu0
  %316 = vdwg.mxu0
  %v317 = vadd.f32 %v231, %v314
  %v319 = vsel %vm53, %v317, 0
  %321 = vmatprep.subr.mxu0 0.0
  %322 = vmatpush1.msra.mxu0 %v239
  %323 = vmatprep.subr.mxu0 0.0
  %324 = vmatpush1.msra.mxu0 %v240
  %325 = vmatprep.subr.mxu0 0.0
  %326 = vmatpush1.msra.mxu0 %v241
  %327 = vmatprep.subr.mxu0 0.0
  %328 = vmatpush1.msra.mxu0 %v242
  %329 = vmatprep.subr.mxu0 0.0
  %330 = vmatpush1.msra.mxu0 0.0
  %331 = vmatprep.subr.mxu0 0.0
  %332 = vmatpush1.msra.mxu0 0.0
  %333 = vmatprep.subr.mxu0 0.0
  %334 = vmatpush1.msra.mxu0 0.0
  %335 = vmatprep.subr.mxu0 0.0
  %336 = vmatpush1.msra.mxu0 0.0
  %337 = vmatprep.subr.mxu0 0.0
  %338 = vmatpush1.msra.mxu0 0.0
  %339 = vmatprep.subr.mxu0 0.0
  %340 = vmatpush1.msra.mxu0 0.0
  %341 = vmatprep.subr.mxu0 0.0
  %342 = vmatpush1.msra.mxu0 0.0
  %343 = vmatprep.subr.mxu0 0.0
  %344 = vmatpush1.msra.mxu0 0.0
  %345 = vmatprep.subr.mxu0 0.0
  %346 = vmatpush1.msra.mxu0 0.0
  %347 = vmatprep.subr.mxu0 0.0
  %348 = vmatpush1.msra.mxu0 0.0
  %349 = vmatprep.subr.mxu0 0.0
  %350 = vmatpush1.msra.mxu0 0.0
  %351 = vmatprep.subr.mxu0 0.0
  %352 = vmatpush1.msra.mxu0 0.0
  %353 = vmatprep.subr.mxu0 0.0
  %354 = vmatpush1.msra.mxu0 0.0
  %355 = vmatprep.subr.mxu0 0.0
  %356 = vmatpush1.msra.mxu0 0.0
  %357 = vmatprep.subr.mxu0 0.0
  %358 = vmatpush1.msra.mxu0 0.0
  %359 = vmatprep.subr.mxu0 0.0
  %360 = vmatpush1.msra.mxu0 0.0
  %361 = vmatprep.subr.mxu0 0.0
  %362 = vmatpush1.msra.mxu0 0.0
  %363 = vmatprep.subr.mxu0 0.0
  %364 = vmatpush1.msra.mxu0 0.0
  %365 = vmatprep.subr.mxu0 0.0
  %366 = vmatpush1.msra.mxu0 0.0
  %367 = vmatprep.subr.mxu0 0.0
  %368 = vmatpush1.msra.mxu0 0.0
  %369 = vmatprep.subr.mxu0 0.0
  %370 = vmatpush1.msra.mxu0 0.0
  %371 = vmatprep.subr.mxu0 0.0
  %372 = vmatpush1.msra.mxu0 0.0
  %373 = vmatprep.subr.mxu0 0.0
  %374 = vmatpush1.msra.mxu0 0.0
  %375 = vmatprep.subr.mxu0 0.0
  %376 = vmatpush1.msra.mxu0 0.0
  %377 = vmatprep.subr.mxu0 0.0
  %378 = vmatpush1.msra.mxu0 0.0
  %379 = vmatprep.subr.mxu0 0.0
  %380 = vmatpush1.msra.mxu0 0.0
  %381 = vmatprep.subr.mxu0 0.0
  %382 = vmatpush1.msra.mxu0 0.0
  %383 = vmatprep.subr.mxu0 0.0
  %384 = vmatpush1.msra.mxu0 0.0
  %385 = vmatprep.mubr.f32.mxu0 0.0
  %386 = vmatmul.mubr.f32.gmra.mrb[0].mxu0 %v319
  %v387 = vpop.f32.mrb[0].mxu0
  %v388 = vadd.f32 0.0, %v387
  %v389 = vpop.f32.mrb[0].mxu0
  %390 = vdwg.mxu0
  %v391 = vadd.f32 %v232, %v388
  %v393 = vsel %vm53, %v391, 0
  %395 = vmatprep.subr.mxu0 0.0
  %396 = vmatpush1.msra.mxu0 %v239
  %397 = vmatprep.subr.mxu0 0.0
  %398 = vmatpush1.msra.mxu0 %v240
  %399 = vmatprep.subr.mxu0 0.0
  %400 = vmatpush1.msra.mxu0 %v241
  %401 = vmatprep.subr.mxu0 0.0
  %402 = vmatpush1.msra.mxu0 %v242
  %403 = vmatprep.subr.mxu0 0.0
  %404 = vmatpush1.msra.mxu0 0.0
  %405 = vmatprep.subr.mxu0 0.0
  %406 = vmatpush1.msra.mxu0 0.0
  %407 = vmatprep.subr.mxu0 0.0
  %408 = vmatpush1.msra.mxu0 0.0
  %409 = vmatprep.subr.mxu0 0.0
  %410 = vmatpush1.msra.mxu0 0.0
  %411 = vmatprep.subr.mxu0 0.0
  %412 = vmatpush1.msra.mxu0 0.0
  %413 = vmatprep.subr.mxu0 0.0
  %414 = vmatpush1.msra.mxu0 0.0
  %415 = vmatprep.subr.mxu0 0.0
  %416 = vmatpush1.msra.mxu0 0.0
  %417 = vmatprep.subr.mxu0 0.0
  %418 = vmatpush1.msra.mxu0 0.0
  %419 = vmatprep.subr.mxu0 0.0
  %420 = vmatpush1.msra.mxu0 0.0
  %421 = vmatprep.subr.mxu0 0.0
  %422 = vmatpush1.msra.mxu0 0.0
  %423 = vmatprep.subr.mxu0 0.0
  %424 = vmatpush1.msra.mxu0 0.0
  %425 = vmatprep.subr.mxu0 0.0
  %426 = vmatpush1.msra.mxu0 0.0
  %427 = vmatprep.subr.mxu0 0.0
  %428 = vmatpush1.msra.mxu0 0.0
  %429 = vmatprep.subr.mxu0 0.0
  %430 = vmatpush1.msra.mxu0 0.0
  %431 = vmatprep.subr.mxu0 0.0
  %432 = vmatpush1.msra.mxu0 0.0
  %433 = vmatprep.subr.mxu0 0.0
  %434 = vmatpush1.msra.mxu0 0.0
  %435 = vmatprep.subr.mxu0 0.0
  %436 = vmatpush1.msra.mxu0 0.0
  %437 = vmatprep.subr.mxu0 0.0
  %438 = vmatpush1.msra.mxu0 0.0
  %439 = vmatprep.subr.mxu0 0.0
  %440 = vmatpush1.msra.mxu0 0.0
  %441 = vmatprep.subr.mxu0 0.0
  %442 = vmatpush1.msra.mxu0 0.0
  %443 = vmatprep.subr.mxu0 0.0
  %444 = vmatpush1.msra.mxu0 0.0
  %445 = vmatprep.subr.mxu0 0.0
  %446 = vmatpush1.msra.mxu0 0.0
  %447 = vmatprep.subr.mxu0 0.0
  %448 = vmatpush1.msra.mxu0 0.0
  %449 = vmatprep.subr.mxu0 0.0
  %450 = vmatpush1.msra.mxu0 0.0
  %451 = vmatprep.subr.mxu0 0.0
  %452 = vmatpush1.msra.mxu0 0.0
  %453 = vmatprep.subr.mxu0 0.0
  %454 = vmatpush1.msra.mxu0 0.0
  %455 = vmatprep.subr.mxu0 0.0
  %456 = vmatpush1.msra.mxu0 0.0
  %457 = vmatprep.subr.mxu0 0.0
  %458 = vmatpush1.msra.mxu0 0.0
  %459 = vmatprep.mubr.f32.mxu0 0.0
  %460 = vmatmul.mubr.f32.gmra.mrb[0].mxu0 %v393
  %v461 = vpop.f32.mrb[0].mxu0
  %v462 = vadd.f32 0.0, %v461
  %v463 = vpop.f32.mrb[0].mxu0
  %464 = vdwg.mxu0
  %v465 = vadd.f32 %v233, %v462
  %v467 = vsel %vm53, %v465, 0
  %469 = vmatprep.subr.mxu0 0.0
  %470 = vmatpush1.msra.mxu0 %v239
  %471 = vmatprep.subr.mxu0 0.0
  %472 = vmatpush1.msra.mxu0 %v240
  %473 = vmatprep.subr.mxu0 0.0
  %474 = vmatpush1.msra.mxu0 %v241
  %475 = vmatprep.subr.mxu0 0.0
  %476 = vmatpush1.msra.mxu0 %v242
  %477 = vmatprep.subr.mxu0 0.0
  %478 = vmatpush1.msra.mxu0 0.0
  %479 = vmatprep.subr.mxu0 0.0
  %480 = vmatpush1.msra.mxu0 0.0
  %481 = vmatprep.subr.mxu0 0.0
  %482 = vmatpush1.msra.mxu0 0.0
  %483 = vmatprep.subr.mxu0 0.0
  %484 = vmatpush1.msra.mxu0 0.0
  %485 = vmatprep.subr.mxu0 0.0
  %486 = vmatpush1.msra.mxu0 0.0
  %487 = vmatprep.subr.mxu0 0.0
  %488 = vmatpush1.msra.mxu0 0.0
  %489 = vmatprep.subr.mxu0 0.0
  %490 = vmatpush1.msra.mxu0 0.0
  %491 = vmatprep.subr.mxu0 0.0
  %492 = vmatpush1.msra.mxu0 0.0
  %493 = vmatprep.subr.mxu0 0.0
  %494 = vmatpush1.msra.mxu0 0.0
  %495 = vmatprep.subr.mxu0 0.0
  %496 = vmatpush1.msra.mxu0 0.0
  %497 = vmatprep.subr.mxu0 0.0
  %498 = vmatpush1.msra.mxu0 0.0
  %499 = vmatprep.subr.mxu0 0.0
  %500 = vmatpush1.msra.mxu0 0.0
  %501 = vmatprep.subr.mxu0 0.0
  %502 = vmatpush1.msra.mxu0 0.0
  %503 = vmatprep.subr.mxu0 0.0
  %504 = vmatpush1.msra.mxu0 0.0
  %505 = vmatprep.subr.mxu0 0.0
  %506 = vmatpush1.msra.mxu0 0.0
  %507 = vmatprep.subr.mxu0 0.0
  %508 = vmatpush1.msra.mxu0 0.0
  %509 = vmatprep.subr.mxu0 0.0
  %510 = vmatpush1.msra.mxu0 0.0
  %511 = vmatprep.subr.mxu0 0.0
  %512 = vmatpush1.msra.mxu0 0.0
  %513 = vmatprep.subr.mxu0 0.0
  %514 = vmatpush1.msra.mxu0 0.0
  %515 = vmatprep.subr.mxu0 0.0
  %516 = vmatpush1.msra.mxu0 0.0
  %517 = vmatprep.subr.mxu0 0.0
  %518 = vmatpush1.msra.mxu0 0.0
  %519 = vmatprep.subr.mxu0 0.0
  %520 = vmatpush1.msra.mxu0 0.0
  %521 = vmatprep.subr.mxu0 0.0
  %522 = vmatpush1.msra.mxu0 0.0
  %523 = vmatprep.subr.mxu0 0.0
  %524 = vmatpush1.msra.mxu0 0.0
  %525 = vmatprep.subr.mxu0 0.0
  %526 = vmatpush1.msra.mxu0 0.0
  %527 = vmatprep.subr.mxu0 0.0
  %528 = vmatpush1.msra.mxu0 0.0
  %529 = vmatprep.subr.mxu0 0.0
  %530 = vmatpush1.msra.mxu0 0.0
  %531 = vmatprep.subr.mxu0 0.0
  %532 = vmatpush1.msra.mxu0 0.0
  %533 = vmatprep.mubr.f32.mxu0 0.0
  %534 = vmatmul.mubr.f32.gmra.mrb[0].mxu0 %v467
  %v535 = vpop.f32.mrb[0].mxu0
  %v536 = vadd.f32 0.0, %v535
  %v537 = vpop.f32.mrb[0].mxu0
  %538 = vdwg.mxu0
  %v539 = vadd.f32 %v234, %v536
  %v541 = vsel %vm53, %v539, 0
  %543 = vmatprep.subr.mxu0 0.0
  %544 = vmatpush1.msra.mxu0 %v239
  %545 = vmatprep.subr.mxu0 0.0
  %546 = vmatpush1.msra.mxu0 %v240
  %547 = vmatprep.subr.mxu0 0.0
  %548 = vmatpush1.msra.mxu0 %v241
  %549 = vmatprep.subr.mxu0 0.0
  %550 = vmatpush1.msra.mxu0 %v242
  %551 = vmatprep.subr.mxu0 0.0
  %552 = vmatpush1.msra.mxu0 0.0
  %553 = vmatprep.subr.mxu0 0.0
  %554 = vmatpush1.msra.mxu0 0.0
  %555 = vmatprep.subr.mxu0 0.0
  %556 = vmatpush1.msra.mxu0 0.0
  %557 = vmatprep.subr.mxu0 0.0
  %558 = vmatpush1.msra.mxu0 0.0
  %559 = vmatprep.subr.mxu0 0.0
  %560 = vmatpush1.msra.mxu0 0.0
  %561 = vmatprep.subr.mxu0 0.0
  %562 = vmatpush1.msra.mxu0 0.0
  %563 = vmatprep.subr.mxu0 0.0
  %564 = vmatpush1.msra.mxu0 0.0
  %565 = vmatprep.subr.mxu0 0.0
  %566 = vmatpush1.msra.mxu0 0.0
  %567 = vmatprep.subr.mxu0 0.0
  %568 = vmatpush1.msra.mxu0 0.0
  %569 = vmatprep.subr.mxu0 0.0
  %570 = vmatpush1.msra.mxu0 0.0
  %571 = vmatprep.subr.mxu0 0.0
  %572 = vmatpush1.msra.mxu0 0.0
  %573 = vmatprep.subr.mxu0 0.0
  %574 = vmatpush1.msra.mxu0 0.0
  %575 = vmatprep.subr.mxu0 0.0
  %576 = vmatpush1.msra.mxu0 0.0
  %577 = vmatprep.subr.mxu0 0.0
  %578 = vmatpush1.msra.mxu0 0.0
  %579 = vmatprep.subr.mxu0 0.0
  %580 = vmatpush1.msra.mxu0 0.0
  %581 = vmatprep.subr.mxu0 0.0
  %582 = vmatpush1.msra.mxu0 0.0
  %583 = vmatprep.subr.mxu0 0.0
  %584 = vmatpush1.msra.mxu0 0.0
  %585 = vmatprep.subr.mxu0 0.0
  %586 = vmatpush1.msra.mxu0 0.0
  %587 = vmatprep.subr.mxu0 0.0
  %588 = vmatpush1.msra.mxu0 0.0
  %589 = vmatprep.subr.mxu0 0.0
  %590 = vmatpush1.msra.mxu0 0.0
  %591 = vmatprep.subr.mxu0 0.0
  %592 = vmatpush1.msra.mxu0 0.0
  %593 = vmatprep.subr.mxu0 0.0
  %594 = vmatpush1.msra.mxu0 0.0
  %595 = vmatprep.subr.mxu0 0.0
  %596 = vmatpush1.msra.mxu0 0.0
  %597 = vmatprep.subr.mxu0 0.0
  %598 = vmatpush1.msra.mxu0 0.0
  %599 = vmatprep.subr.mxu0 0.0
  %600 = vmatpush1.msra.mxu0 0.0
  %601 = vmatprep.subr.mxu0 0.0
  %602 = vmatpush1.msra.mxu0 0.0
  %603 = vmatprep.subr.mxu0 0.0
  %604 = vmatpush1.msra.mxu0 0.0
  %605 = vmatprep.subr.mxu0 0.0
  %606 = vmatpush1.msra.mxu0 0.0
  %607 = vmatprep.mubr.f32.mxu0 0.0
  %608 = vmatmul.mubr.f32.gmra.mrb[0].mxu0 %v541
  %v609 = vpop.f32.mrb[0].mxu0
  %v610 = vadd.f32 0.0, %v609
  %v611 = vpop.f32.mrb[0].mxu0
  %612 = vdwg.mxu0
  %v613 = vadd.f32 %v235, %v610
  %v615 = vsel %vm53, %v613, 0
  %617 = vmatprep.subr.mxu0 0.0
  %618 = vmatpush1.msra.mxu0 %v239
  %619 = vmatprep.subr.mxu0 0.0
  %620 = vmatpush1.msra.mxu0 %v240
  %621 = vmatprep.subr.mxu0 0.0
  %622 = vmatpush1.msra.mxu0 %v241
  %623 = vmatprep.subr.mxu0 0.0
  %624 = vmatpush1.msra.mxu0 %v242
  %625 = vmatprep.subr.mxu0 0.0
  %626 = vmatpush1.msra.mxu0 0.0
  %627 = vmatprep.subr.mxu0 0.0
  %628 = vmatpush1.msra.mxu0 0.0
  %629 = vmatprep.subr.mxu0 0.0
  %630 = vmatpush1.msra.mxu0 0.0
  %631 = vmatprep.subr.mxu0 0.0
  %632 = vmatpush1.msra.mxu0 0.0
  %633 = vmatprep.subr.mxu0 0.0
  %634 = vmatpush1.msra.mxu0 0.0
  %635 = vmatprep.subr.mxu0 0.0
  %636 = vmatpush1.msra.mxu0 0.0
  %637 = vmatprep.subr.mxu0 0.0
  %638 = vmatpush1.msra.mxu0 0.0
  %639 = vmatprep.subr.mxu0 0.0
  %640 = vmatpush1.msra.mxu0 0.0
  %641 = vmatprep.subr.mxu0 0.0
  %642 = vmatpush1.msra.mxu0 0.0
  %643 = vmatprep.subr.mxu0 0.0
  %644 = vmatpush1.msra.mxu0 0.0
  %645 = vmatprep.subr.mxu0 0.0
  %646 = vmatpush1.msra.mxu0 0.0
  %647 = vmatprep.subr.mxu0 0.0
  %648 = vmatpush1.msra.mxu0 0.0
  %649 = vmatprep.subr.mxu0 0.0
  %650 = vmatpush1.msra.mxu0 0.0
  %651 = vmatprep.subr.mxu0 0.0
  %652 = vmatpush1.msra.mxu0 0.0
  %653 = vmatprep.subr.mxu0 0.0
  %654 = vmatpush1.msra.mxu0 0.0
  %655 = vmatprep.subr.mxu0 0.0
  %656 = vmatpush1.msra.mxu0 0.0
  %657 = vmatprep.subr.mxu0 0.0
  %658 = vmatpush1.msra.mxu0 0.0
  %659 = vmatprep.subr.mxu0 0.0
  %660 = vmatpush1.msra.mxu0 0.0
  %661 = vmatprep.subr.mxu0 0.0
  %662 = vmatpush1.msra.mxu0 0.0
  %663 = vmatprep.subr.mxu0 0.0
  %664 = vmatpush1.msra.mxu0 0.0
  %665 = vmatprep.subr.mxu0 0.0
  %666 = vmatpush1.msra.mxu0 0.0
  %667 = vmatprep.subr.mxu0 0.0
  %668 = vmatpush1.msra.mxu0 0.0
  %669 = vmatprep.subr.mxu0 0.0
  %670 = vmatpush1.msra.mxu0 0.0
  %671 = vmatprep.subr.mxu0 0.0
  %672 = vmatpush1.msra.mxu0 0.0
  %673 = vmatprep.subr.mxu0 0.0
  %674 = vmatpush1.msra.mxu0 0.0
  %675 = vmatprep.subr.mxu0 0.0
  %676 = vmatpush1.msra.mxu0 0.0
  %677 = vmatprep.subr.mxu0 0.0
  %678 = vmatpush1.msra.mxu0 0.0
  %679 = vmatprep.subr.mxu0 0.0
  %680 = vmatpush1.msra.mxu0 0.0
  %681 = vmatprep.mubr.f32.mxu0 0.0
  %682 = vmatmul.mubr.f32.gmra.mrb[0].mxu0 %v615
  %v683 = vpop.f32.mrb[0].mxu0
  %v684 = vadd.f32 0.0, %v683
  %v685 = vpop.f32.mrb[0].mxu0
  %686 = vdwg.mxu0
  %v687 = vadd.f32 %v236, %v684
  %v689 = vsel %vm53, %v687, 0
  %691 = vmatprep.subr.mxu0 0.0
  %692 = vmatpush1.msra.mxu0 %v239
  %693 = vmatprep.subr.mxu0 0.0
  %694 = vmatpush1.msra.mxu0 %v240
  %695 = vmatprep.subr.mxu0 0.0
  %696 = vmatpush1.msra.mxu0 %v241
  %697 = vmatprep.subr.mxu0 0.0
  %698 = vmatpush1.msra.mxu0 %v242
  %699 = vmatprep.subr.mxu0 0.0
  %700 = vmatpush1.msra.mxu0 0.0
  %701 = vmatprep.subr.mxu0 0.0
  %702 = vmatpush1.msra.mxu0 0.0
  %703 = vmatprep.subr.mxu0 0.0
  %704 = vmatpush1.msra.mxu0 0.0
  %705 = vmatprep.subr.mxu0 0.0
  %706 = vmatpush1.msra.mxu0 0.0
  %707 = vmatprep.subr.mxu0 0.0
  %708 = vmatpush1.msra.mxu0 0.0
  %709 = vmatprep.subr.mxu0 0.0
  %710 = vmatpush1.msra.mxu0 0.0
  %711 = vmatprep.subr.mxu0 0.0
  %712 = vmatpush1.msra.mxu0 0.0
  %713 = vmatprep.subr.mxu0 0.0
  %714 = vmatpush1.msra.mxu0 0.0
  %715 = vmatprep.subr.mxu0 0.0
  %716 = vmatpush1.msra.mxu0 0.0
  %717 = vmatprep.subr.mxu0 0.0
  %718 = vmatpush1.msra.mxu0 0.0
  %719 = vmatprep.subr.mxu0 0.0
  %720 = vmatpush1.msra.mxu0 0.0
  %721 = vmatprep.subr.mxu0 0.0
  %722 = vmatpush1.msra.mxu0 0.0
  %723 = vmatprep.subr.mxu0 0.0
  %724 = vmatpush1.msra.mxu0 0.0
  %725 = vmatprep.subr.mxu0 0.0
  %726 = vmatpush1.msra.mxu0 0.0
  %727 = vmatprep.subr.mxu0 0.0
  %728 = vmatpush1.msra.mxu0 0.0
  %729 = vmatprep.subr.mxu0 0.0
  %730 = vmatpush1.msra.mxu0 0.0
  %731 = vmatprep.subr.mxu0 0.0
  %732 = vmatpush1.msra.mxu0 0.0
  %733 = vmatprep.subr.mxu0 0.0
  %734 = vmatpush1.msra.mxu0 0.0
  %735 = vmatprep.subr.mxu0 0.0
  %736 = vmatpush1.msra.mxu0 0.0
  %737 = vmatprep.subr.mxu0 0.0
  %738 = vmatpush1.msra.mxu0 0.0
  %739 = vmatprep.subr.mxu0 0.0
  %740 = vmatpush1.msra.mxu0 0.0
  %741 = vmatprep.subr.mxu0 0.0
  %742 = vmatpush1.msra.mxu0 0.0
  %743 = vmatprep.subr.mxu0 0.0
  %744 = vmatpush1.msra.mxu0 0.0
  %745 = vmatprep.subr.mxu0 0.0
  %746 = vmatpush1.msra.mxu0 0.0
  %747 = vmatprep.subr.mxu0 0.0
  %748 = vmatpush1.msra.mxu0 0.0
  %749 = vmatprep.subr.mxu0 0.0
  %750 = vmatpush1.msra.mxu0 0.0
  %751 = vmatprep.subr.mxu0 0.0
  %752 = vmatpush1.msra.mxu0 0.0
  %753 = vmatprep.subr.mxu0 0.0
  %754 = vmatpush1.msra.mxu0 0.0
  %755 = vmatprep.mubr.f32.mxu0 0.0
  %756 = vmatmul.mubr.f32.gmra.mrb[0].mxu0 %v689
  %v757 = vpop.f32.mrb[0].mxu0
  %v758 = vadd.f32 0.0, %v757
  %v759 = vpop.f32.mrb[0].mxu0
  %760 = vdwg.mxu0
  %v761 = vadd.f32 %v237, %v758
  %v763 = vsel %vm53, %v761, 0
  %765 = vmatprep.subr.mxu0 0.0
  %766 = vmatpush1.msra.mxu0 %v239
  %767 = vmatprep.subr.mxu0 0.0
  %768 = vmatpush1.msra.mxu0 %v240
  %769 = vmatprep.subr.mxu0 0.0
  %770 = vmatpush1.msra.mxu0 %v241
  %771 = vmatprep.subr.mxu0 0.0
  %772 = vmatpush1.msra.mxu0 %v242
  %773 = vmatprep.subr.mxu0 0.0
  %774 = vmatpush1.msra.mxu0 0.0
  %775 = vmatprep.subr.mxu0 0.0
  %776 = vmatpush1.msra.mxu0 0.0
  %777 = vmatprep.subr.mxu0 0.0
  %778 = vmatpush1.msra.mxu0 0.0
  %779 = vmatprep.subr.mxu0 0.0
  %780 = vmatpush1.msra.mxu0 0.0
  %781 = vmatprep.subr.mxu0 0.0
  %782 = vmatpush1.msra.mxu0 0.0
  %783 = vmatprep.subr.mxu0 0.0
  %784 = vmatpush1.msra.mxu0 0.0
  %785 = vmatprep.subr.mxu0 0.0
  %786 = vmatpush1.msra.mxu0 0.0
  %787 = vmatprep.subr.mxu0 0.0
  %788 = vmatpush1.msra.mxu0 0.0
  %789 = vmatprep.subr.mxu0 0.0
  %790 = vmatpush1.msra.mxu0 0.0
  %791 = vmatprep.subr.mxu0 0.0
  %792 = vmatpush1.msra.mxu0 0.0
  %793 = vmatprep.subr.mxu0 0.0
  %794 = vmatpush1.msra.mxu0 0.0
  %795 = vmatprep.subr.mxu0 0.0
  %796 = vmatpush1.msra.mxu0 0.0
  %797 = vmatprep.subr.mxu0 0.0
  %798 = vmatpush1.msra.mxu0 0.0
  %799 = vmatprep.subr.mxu0 0.0
  %800 = vmatpush1.msra.mxu0 0.0
  %801 = vmatprep.subr.mxu0 0.0
  %802 = vmatpush1.msra.mxu0 0.0
  %803 = vmatprep.subr.mxu0 0.0
  %804 = vmatpush1.msra.mxu0 0.0
  %805 = vmatprep.subr.mxu0 0.0
  %806 = vmatpush1.msra.mxu0 0.0
  %807 = vmatprep.subr.mxu0 0.0
  %808 = vmatpush1.msra.mxu0 0.0
  %809 = vmatprep.subr.mxu0 0.0
  %810 = vmatpush1.msra.mxu0 0.0
  %811 = vmatprep.subr.mxu0 0.0
  %812 = vmatpush1.msra.mxu0 0.0
  %813 = vmatprep.subr.mxu0 0.0
  %814 = vmatpush1.msra.mxu0 0.0
  %815 = vmatprep.subr.mxu0 0.0
  %816 = vmatpush1.msra.mxu0 0.0
  %817 = vmatprep.subr.mxu0 0.0
  %818 = vmatpush1.msra.mxu0 0.0
  %819 = vmatprep.subr.mxu0 0.0
  %820 = vmatpush1.msra.mxu0 0.0
  %821 = vmatprep.subr.mxu0 0.0
  %822 = vmatpush1.msra.mxu0 0.0
  %823 = vmatprep.subr.mxu0 0.0
  %824 = vmatpush1.msra.mxu0 0.0
  %825 = vmatprep.subr.mxu0 0.0
  %826 = vmatpush1.msra.mxu0 0.0
  %827 = vmatprep.subr.mxu0 0.0
  %828 = vmatpush1.msra.mxu0 0.0
  %829 = vmatprep.mubr.f32.mxu0 0.0
  %830 = vmatmul.mubr.f32.gmra.mrb[0].mxu0 %v763
  %v831 = vpop.f32.mrb[0].mxu0
  %v832 = vadd.f32 0.0, %v831
  %v833 = vpop.f32.mrb[0].mxu0
  %834 = vdwg.mxu0
  %v835 = vadd.f32 %v238, %v832
  %836 = vst.msk [vmem:[%s10] sm:$0xff] %vm53, %v835
  %v837 = vld [vmem:[%s0 + $0x38] sm:$0xff]
  %v838 = vld [vmem:[%s6] sm:$0xff]
  %v839 = vld [vmem:[%s6 + $0x8] sm:$0xff]
  %v840 = vld [vmem:[%s6 + $0x10] sm:$0xff]
  %v841 = vld [vmem:[%s6 + $0x18] sm:$0xff]
  %v842 = vld [vmem:[%s7] sm:$0xff]
  %v843 = vld [vmem:[%s7 + $0x8] sm:$0xff]
  %v844 = vld [vmem:[%s7 + $0x10] sm:$0xff]
  %v845 = vld [vmem:[%s7 + $0x18] sm:$0xff]
  %846 = vmatprep.subr.mxu0 0.0
  %847 = vmatpush1.msra.mxu0 %v842
  %848 = vmatprep.subr.mxu0 0.0
  %849 = vmatpush1.msra.mxu0 %v843
  %850 = vmatprep.subr.mxu0 0.0
  %851 = vmatpush1.msra.mxu0 %v844
  %852 = vmatprep.subr.mxu0 0.0
  %853 = vmatpush1.msra.mxu0 %v845
  %854 = vmatprep.subr.mxu0 0.0
  %855 = vmatpush1.msra.mxu0 0.0
  %856 = vmatprep.subr.mxu0 0.0
  %857 = vmatpush1.msra.mxu0 0.0
  %858 = vmatprep.subr.mxu0 0.0
  %859 = vmatpush1.msra.mxu0 0.0
  %860 = vmatprep.subr.mxu0 0.0
  %861 = vmatpush1.msra.mxu0 0.0
  %862 = vmatprep.subr.mxu0 0.0
  %863 = vmatpush1.msra.mxu0 0.0
  %864 = vmatprep.subr.mxu0 0.0
  %865 = vmatpush1.msra.mxu0 0.0
  %866 = vmatprep.subr.mxu0 0.0
  %867 = vmatpush1.msra.mxu0 0.0
  %868 = vmatprep.subr.mxu0 0.0
  %869 = vmatpush1.msra.mxu0 0.0
  %870 = vmatprep.subr.mxu0 0.0
  %871 = vmatpush1.msra.mxu0 0.0
  %872 = vmatprep.subr.mxu0 0.0
  %873 = vmatpush1.msra.mxu0 0.0
  %874 = vmatprep.subr.mxu0 0.0
  %875 = vmatpush1.msra.mxu0 0.0
  %876 = vmatprep.subr.mxu0 0.0
  %877 = vmatpush1.msra.mxu0 0.0
  %878 = vmatprep.subr.mxu0 0.0
  %879 = vmatpush1.msra.mxu0 0.0
  %880 = vmatprep.subr.mxu0 0.0
  %881 = vmatpush1.msra.mxu0 0.0
  %882 = vmatprep.subr.mxu0 0.0
  %883 = vmatpush1.msra.mxu0 0.0
  %884 = vmatprep.subr.mxu0 0.0
  %885 = vmatpush1.msra.mxu0 0.0
  %886 = vmatprep.subr.mxu0 0.0
  %887 = vmatpush1.msra.mxu0 0.0
  %888 = vmatprep.subr.mxu0 0.0
  %889 = vmatpush1.msra.mxu0 0.0
  %890 = vmatprep.subr.mxu0 0.0
  %891 = vmatpush1.msra.mxu0 0.0
  %892 = vmatprep.subr.mxu0 0.0
  %893 = vmatpush1.msra.mxu0 0.0
  %894 = vmatprep.subr.mxu0 0.0
  %895 = vmatpush1.msra.mxu0 0.0
  %896 = vmatprep.subr.mxu0 0.0
  %897 = vmatpush1.msra.mxu0 0.0
  %898 = vmatprep.subr.mxu0 0.0
  %899 = vmatpush1.msra.mxu0 0.0
  %900 = vmatprep.subr.mxu0 0.0
  %901 = vmatpush1.msra.mxu0 0.0
  %902 = vmatprep.subr.mxu0 0.0
  %903 = vmatpush1.msra.mxu0 0.0
  %904 = vmatprep.subr.mxu0 0.0
  %905 = vmatpush1.msra.mxu0 0.0
  %906 = vmatprep.subr.mxu0 0.0
  %907 = vmatpush1.msra.mxu0 0.0
  %908 = vmatprep.subr.mxu0 0.0
  %909 = vmatpush1.msra.mxu0 0.0
  %910 = vmatprep.mubr.f32.mxu0 0.0
  %911 = vmatmul.mubr.f32.gmra.mrb[0].mxu0 %v763
  %v912 = vpop.f32.mrb[0].mxu0
  %v913 = vadd.f32 0.0, %v912
  %v914 = vpop.f32.mrb[0].mxu0
  %915 = vdwg.mxu0
  %v917 = vsel %vm53, %v837, 0
  %919 = vmatprep.subr.mxu0 0.0
  %920 = vmatpush1.msra.mxu0 %v838
  %921 = vmatprep.subr.mxu0 0.0
  %922 = vmatpush1.msra.mxu0 %v839
  %923 = vmatprep.subr.mxu0 0.0
  %924 = vmatpush1.msra.mxu0 %v840
  %925 = vmatprep.subr.mxu0 0.0
  %926 = vmatpush1.msra.mxu0 %v841
  %927 = vmatprep.subr.mxu0 0.0
  %928 = vmatpush1.msra.mxu0 0.0
  %929 = vmatprep.subr.mxu0 0.0
  %930 = vmatpush1.msra.mxu0 0.0
  %931 = vmatprep.subr.mxu0 0.0
  %932 = vmatpush1.msra.mxu0 0.0
  %933 = vmatprep.subr.mxu0 0.0
  %934 = vmatpush1.msra.mxu0 0.0
  %935 = vmatprep.subr.mxu0 0.0
  %936 = vmatpush1.msra.mxu0 0.0
  %937 = vmatprep.subr.mxu0 0.0
  %938 = vmatpush1.msra.mxu0 0.0
  %939 = vmatprep.subr.mxu0 0.0
  %940 = vmatpush1.msra.mxu0 0.0
  %941 = vmatprep.subr.mxu0 0.0
  %942 = vmatpush1.msra.mxu0 0.0
  %943 = vmatprep.subr.mxu0 0.0
  %944 = vmatpush1.msra.mxu0 0.0
  %945 = vmatprep.subr.mxu0 0.0
  %946 = vmatpush1.msra.mxu0 0.0
  %947 = vmatprep.subr.mxu0 0.0
  %948 = vmatpush1.msra.mxu0 0.0
  %949 = vmatprep.subr.mxu0 0.0
  %950 = vmatpush1.msra.mxu0 0.0
  %951 = vmatprep.subr.mxu0 0.0
  %952 = vmatpush1.msra.mxu0 0.0
  %953 = vmatprep.subr.mxu0 0.0
  %954 = vmatpush1.msra.mxu0 0.0
  %955 = vmatprep.subr.mxu0 0.0
  %956 = vmatpush1.msra.mxu0 0.0
  %957 = vmatprep.subr.mxu0 0.0
  %958 = vmatpush1.msra.mxu0 0.0
  %959 = vmatprep.subr.mxu0 0.0
  %960 = vmatpush1.msra.mxu0 0.0
  %961 = vmatprep.subr.mxu0 0.0
  %962 = vmatpush1.msra.mxu0 0.0
  %963 = vmatprep.subr.mxu0 0.0
  %964 = vmatpush1.msra.mxu0 0.0
  %965 = vmatprep.subr.mxu0 0.0
  %966 = vmatpush1.msra.mxu0 0.0
  %967 = vmatprep.subr.mxu0 0.0
  %968 = vmatpush1.msra.mxu0 0.0
  %969 = vmatprep.subr.mxu0 0.0
  %970 = vmatpush1.msra.mxu0 0.0
  %971 = vmatprep.subr.mxu0 0.0
  %972 = vmatpush1.msra.mxu0 0.0
  %973 = vmatprep.subr.mxu0 0.0
  %974 = vmatpush1.msra.mxu0 0.0
  %975 = vmatprep.subr.mxu0 0.0
  %976 = vmatpush1.msra.mxu0 0.0
  %977 = vmatprep.subr.mxu0 0.0
  %978 = vmatpush1.msra.mxu0 0.0
  %979 = vmatprep.subr.mxu0 0.0
  %980 = vmatpush1.msra.mxu0 0.0
  %981 = vmatprep.subr.mxu0 0.0
  %982 = vmatpush1.msra.mxu0 0.0
  %983 = vmatprep.mubr.f32.mxu0 0.0
  %984 = vmatmul.mubr.f32.gmra.mrb[0].mxu0 %v917
  %v985 = vpop.f32.mrb[0].mxu0
  %v986 = vadd.f32 %v913, %v985
  %v987 = vpop.f32.mrb[0].mxu0
  %988 = vdwg.mxu0
  %v989 = vld [vmem:[%s8] sm:$0x1]
  %v991 = vlaneseq
  %v992 = vshrl.u32 %v991, 7
  %v993 = vsub.s32 0, %v992
  %v994 = vrot.slane %v989, %v993
  %v996 = vadd.f32 %v986, %v994
  %vm997 = vcmask 146432
  %v998 = vsel %vm997, %v996, -inf
  %999 = vmax.xlane.f32.xlu0 %v998
  %v1000 = vpop.xlane.xlu0 %999
  %v1001 = vsub.f32 %v996, %v1000
  %v1002 = vmul.f32 %v1001, 1.442695
  %v1003 = vpow.pop %v1002
  %v1004 = vsel %vm997, %v1003, 0.0
  %1005 = vadd.xlane.f32.xlu0 %v1004
  %v1006 = vpop.xlane.xlu0 %1005
  %v1007 = vlog2.pop %v1006
  %v1008 = vmul.f32 %v1007, 0.6931472
  %v1009 = vsub.f32 %v1001, %v1008
  %1010 = vst.msk [vmem:[%s9] sm:$0xff] %vm997, %v1009
  // Predicated region
  $region38: #{rnn_sequence.1} parent=0 // pred_check
    _
  $region39: #{rnn_sequence.1} parent=0 // pred_check_branch
    %1012 = sbr.rel (0) target = $region41
  $region40: #{rnn_sequence.1} parent=0 // pred_region
    _
  $region41: #{rnn_sequence.1} parent=0 // pred_fallthru
    _
  // Predicated region
  $region42: #{rnn_sequence.1} parent=0 // pred_check
    _
  $region43: #{rnn_sequence.1} parent=0 // pred_check_branch
    %1014 = sbr.rel (0) target = $region45
  $region44: #{rnn_sequence.1} parent=0 // pred_region
    _
  $region45: #{rnn_sequence.1} parent=0 // pred_fallthru
    _
  // Predicated region
  $region46: #{rnn_sequence.1} parent=0 // pred_check
    _
  $region47: #{rnn_sequence.1} parent=0 // pred_check_branch
    %1016 = sbr.rel (0) target = $region49
  $region48: #{rnn_sequence.1} parent=0 // pred_region
    _
  $region49: #{rnn_sequence.1} parent=0 // pred_fallthru
    _
  // Predicated region
  $region50: #{rnn_sequence.1} parent=0 // pred_check
    _
  $region51: #{rnn_sequence.1} parent=0 // pred_check_branch
    %1018 = sbr.rel (0) target = $region53
  $region52: #{rnn_sequence.1} parent=0 // pred_region
    _
  $region53: #{rnn_sequence.1} parent=0 // pred_fallthru
    _

</llo_original>
